<compile_context>
chip_gen: v5e
topology: v5e:2x2
jax: 0.10.0
libtpu: 0.0.40
codegen_flags: <defaults>
</compile_context>

<pallas_src>
import functools

import jax
import jax.numpy as jnp
from jax.experimental import pallas as pl
from jax.experimental.pallas import tpu as pltpu


_LANE = 128
_MAX_ROW_BLOCK = 512            # review: TM ~ 512; budget below shrinks it further
_SLAB_BUDGET_BYTES = 24 << 20   # target for double-buffered (TM, Np) f32 slabs
_VMEM_LIMIT_BYTES = 48 << 20    # explicit scoped limit; < v7x 64 MiB physical


def _round_up(x, m):
    return ((x + m - 1) // m) * m


def _choose_tiling(n, symmetric, row_block=None):
    """Return (padded size Np, row tile TM); TM is a multiple of 128 dividing Np."""
    np_ = _round_up(max(int(n), 1), _LANE)
    if row_block is not None:
        row_block = int(row_block)
        if row_block % _LANE or np_ % row_block:
            raise ValueError(f"row_block must be a multiple of {_LANE} dividing {np_}")
        return np_, row_block
    # pass 2 holds `slabs` (TM, Np) f32 buffers, each double-buffered by BlockSpec.
    slabs = 3 if symmetric else 2          # row slab (+ transposed slab) + output slab
    tm = _LANE
    t = _LANE
    while t <= min(np_, _MAX_ROW_BLOCK):
        if np_ % t == 0 and 2 * slabs * t * np_ * 4 <= _SLAB_BUDGET_BYTES:
            tm = t
        t += _LANE
    return np_, tm


# ----------------------------------------------------------------------------
# Kernels
# ----------------------------------------------------------------------------
def _row_sum_kernel(a_row_ref, rs_ref):
    # Per-row-tile row sums of A.
    rs_ref[...] = jnp.sum(a_row_ref[...], axis=1, keepdims=True)


def _row_col_sum_kernel(a_row_ref, a_col_ref, rs_ref, cs_ref):
    # Symmetric path: row sums of A (row slab) and column sums of A (column
    # slab delivered by a transposed index_map -- no in-kernel full transpose).
    rs_ref[...] = jnp.sum(a_row_ref[...], axis=1, keepdims=True)
    cs_ref[...] = jnp.sum(a_col_ref[...], axis=0, keepdims=True)


def _scale_and_store(a, dc, dr, out_ref, tm):
    # a: (TM, Np) row tile of sym(A); dc: (TM, 1) sublane-major degree slice;
    # dr: (1, Np) lane-major full degree row.  Adds I for this tile with a
    # single per-tile iota compare (global col id == global row id), then
    # out = d[:,None] * (a + I) * d[None,:].  Padded diagonal entries pick up
    # the +1 too, but their degree is 0 and they are sliced off afterwards.
    npad = a.shape[1]
    col_ids = jax.lax.broadcasted_iota(jnp.int32, (tm, npad), 1)
    row_ids = (jax.lax.broadcasted_iota(jnp.int32, (tm, 1), 0)
               + pl.program_id(0) * tm)
    a = a + (col_ids == row_ids).astype(a.dtype)
    out_ref[...] = ((dc * a) * dr).astype(out_ref.dtype)


def _scale_kernel(a_row_ref, d_col_ref, d_row_ref, out_ref, *, tm):
    _scale_and_store(a_row_ref[...], d_col_ref[...], d_row_ref[...], out_ref, tm)


def _scale_sym_kernel(a_row_ref, a_col_ref, d_col_ref, d_row_ref, out_ref, *, tm):
    # Tile-granularity transpose only (XLU work hidden under the doubled DMA).
    a_sym = (a_row_ref[...] + a_col_ref[...].T) * jnp.float32(0.5)
    _scale_and_store(a_sym, d_col_ref[...], d_row_ref[...], out_ref, tm)


# ----------------------------------------------------------------------------
# Wrappers
# ----------------------------------------------------------------------------
def estimate_adj_forward(estimated_adj):
    """EstimateAdj.forward(): returns the parameter.  Deliberately NOT a Pallas
    kernel -- an identity copy would burn 2*4*N^2 bytes of HBM plus a dispatch."""
    return estimated_adj


@functools.partial(jax.jit, static_argnames=("symmetric", "row_block"))
def estimate_adj_normalize(estimated_adj, symmetric=False, row_block=None):
    """EstimateAdj.normalize(): D^{-1/2} (sym(A) + I) D^{-1/2}."""
    n = int(estimated_adj.shape[0])
    np_, tm = _choose_tiling(n, symmetric, row_block)
    a = estimated_adj.astype(jnp.float32)
    if np_ != n:
        a = jnp.pad(a, ((0, np_ - n), (0, np_ - n)))   # lane-dense tiles

    grid = (np_ // tm,)
    cparams = pltpu.CompilerParams(
        dimension_semantics=("parallel",),   # v7x megacore shards row tiles
        vmem_limit_bytes=_VMEM_LIMIT_BYTES,
    )
    row_spec = pl.BlockSpec((tm, np_), lambda i: (i, 0))
    col_spec = pl.BlockSpec((np_, tm), lambda i: (0, i))   # transposed operand
    rs_spec = pl.BlockSpec((tm, 1), lambda i: (i, 0))
    cs_spec = pl.BlockSpec((1, tm), lambda i: (0, i))

    # ---- pass 1: row (and column) sums, row-tiled & pipelined --------------
    if symmetric:
        rs, cs = pl.pallas_call(
            _row_col_sum_kernel,
            grid=grid,
            in_specs=[row_spec, col_spec],
            out_specs=(rs_spec, cs_spec),
            out_shape=(jax.ShapeDtypeStruct((np_, 1), jnp.float32),
                       jax.ShapeDtypeStruct((1, np_), jnp.float32)),
            compiler_params=cparams,
        )(a, a)
        deg = (rs + cs.reshape(np_, 1)) * jnp.float32(0.5)   # rowsum((A+A.T)/2)
    else:
        deg = pl.pallas_call(
            _row_sum_kernel,
            grid=grid,
            in_specs=[row_spec],
            out_specs=rs_spec,
            out_shape=jax.ShapeDtypeStruct((np_, 1), jnp.float32),
            compiler_params=cparams,
        )(a)

    # O(N) finalize in XLA: +1 per *valid* row for the +I term (padded rows
    # stay 0 -> rsqrt -> inf -> 0), rsqrt instead of pow(-0.5), keep the isinf
    # guard so NaN from negative row sums still propagates like torch.pow.
    valid = (jnp.arange(np_) < n).astype(jnp.float32).reshape(np_, 1)
    deg = deg + valid
    d_col = jax.lax.rsqrt(deg)
    d_col = jnp.where(jnp.isinf(d_col), jnp.float32(0.0), d_col)   # (Np, 1)
    d_row = d_col.reshape(1, np_)                                  # free relayout in HBM

    # ---- pass 2: elementwise scale + I, row-tiled & pipelined ---------------
    d_col_spec = pl.BlockSpec((tm, 1), lambda i: (i, 0))
    d_row_spec = pl.BlockSpec((1, np_), lambda i: (0, 0))
    out_spec = pl.BlockSpec((tm, np_), lambda i: (i, 0))   # lane-dense stores
    out_shape = jax.ShapeDtypeStruct((np_, np_), jnp.float32)

    if symmetric:
        out = pl.pallas_call(
            functools.partial(_scale_sym_kernel, tm=tm),
            grid=grid,
            in_specs=[row_spec, col_spec, d_col_spec, d_row_spec],
            out_specs=out_spec,
            out_shape=out_shape,
            compiler_params=cparams,
        )(a, a, d_col, d_row)
    else:
        out = pl.pallas_call(
            functools.partial(_scale_kernel, tm=tm),
            grid=grid,
            in_specs=[row_spec, d_col_spec, d_row_spec],
            out_specs=out_spec,
            out_shape=out_shape,
            compiler_params=cparams,
        )(a, d_col, d_row)

    if np_ != n:
        out = out[:n, :n]
    return out


class EstimateAdj:
    """JAX mirror of the PyTorch module (parameter is a plain jnp array)."""

    def __init__(self, adj, symmetric=False):
        self.estimated_adj = jnp.asarray(adj, dtype=jnp.float32)  # _init_estimation
        self.symmetric = symmetric

    def forward(self):
        return estimate_adj_forward(self.estimated_adj)

    def normalize(self, row_block=None):
        return estimate_adj_normalize(self.estimated_adj,
                                      symmetric=self.symmetric,
                                      row_block=row_block)


# Pure-JAX reference (mirrors the PyTorch code) for a quick sanity check.
def _normalize_ref(adj, symmetric=False):
    a = (adj + adj.T) / 2.0 if symmetric else adj
    a = a + jnp.eye(a.shape[0], dtype=a.dtype)
    rowsum = a.sum(1)
    r_inv = rowsum ** (-0.5)
    r_inv = jnp.where(jnp.isinf(r_inv), 0.0, r_inv)
    d = jnp.diag(r_inv)
    return d @ a @ d


# ----------------------------------------------------------------------------
# Main
# ----------------------------------------------------------------------------
if __name__ == "__main__":
    key = jax.random.PRNGKey(0)
    k1, k2 = jax.random.split(key)

    # Small demo shapes (the Pallas path is aimed at large graphs; at toy sizes
    # dispatch overhead dominates, so keep the demo just big enough to exercise
    # both the padded single-tile path and the multi-tile pipelined path).
    n1 = 200   # not a multiple of 128 -> exercises zero-padding + slice-back
    n2 = 256   # with row_block=128 -> grid of 2 row tiles
    adj1 = jax.random.uniform(k1, (n1, n1), dtype=jnp.float32)
    adj2 = jax.random.uniform(k2, (n2, n2), dtype=jnp.float32)

    m1 = EstimateAdj(adj1, symmetric=False)
    m1s = EstimateAdj(adj1, symmetric=True)
    m2 = EstimateAdj(adj2, symmetric=False)

    # forward(): the parameter itself, no kernel, no HBM copy.
    fwd = m1.forward()
    assert fwd.shape == (n1, n1)
    assert jnp.allclose(fwd, adj1)

    out1 = jax.block_until_ready(m1.normalize())
    out1s = jax.block_until_ready(m1s.normalize())
    out2 = jax.block_until_ready(m2.normalize(row_block=128))
    out2s = jax.block_until_ready(
        estimate_adj_normalize(adj2, symmetric=True, row_block=128))

    assert out1.shape == (n1, n1) and out2.shape == (n2, n2)
    assert jnp.allclose(out1, _normalize_ref(adj1, symmetric=False), atol=1e-5, rtol=1e-5)
    assert jnp.allclose(out1s, _normalize_ref(adj1, symmetric=True), atol=1e-5, rtol=1e-5)
    assert jnp.allclose(out2, _normalize_ref(adj2, symmetric=False), atol=1e-5, rtol=1e-5)
    assert jnp.allclose(out2s, _normalize_ref(adj2, symmetric=True), atol=1e-5, rtol=1e-5)

    print("KERNEL_OK")
</pallas_src>

<mosaic_0001>
module attributes {stable_mosaic.version = 11 : i64} {
  func.func @_scale_kernel(%arg0: i32, %arg1: memref<256x256xf32, #tpu.memory_space<vmem>>, %arg2: memref<256x1xf32, #tpu.memory_space<vmem>>, %arg3: memref<1x256xf32, #tpu.memory_space<vmem>>, %arg4: memref<256x256xf32, #tpu.memory_space<vmem>>) attributes {dimension_semantics = [#tpu.dimension_semantics<parallel>], iteration_bounds = array<i64: 1>, scalar_prefetch = 0 : i64, scratch_operands = 0 : i64, tpu.core_type = #tpu.core_type<tc>, window_params = [{transform_indices = @transform_0, window_bounds = array<i64: 256, 256>}, {transform_indices = @transform_1, window_bounds = array<i64: 256, 1>}, {pipeline_mode = #tpu.pipeline_mode<synchronous>, transform_indices = @transform_2, window_bounds = array<i64: 1, 256>}, {transform_indices = @transform_3, window_bounds = array<i64: 256, 256>}]} {
    %c0 = arith.constant 0 : index
    %c0_0 = arith.constant 0 : index
    %0 = vector.load %arg1[%c0, %c0_0] : memref<256x256xf32, #tpu.memory_space<vmem>>, vector<256x256xf32>
    %c0_1 = arith.constant 0 : index
    %c0_2 = arith.constant 0 : index
    %1 = vector.load %arg2[%c0_1, %c0_2] : memref<256x1xf32, #tpu.memory_space<vmem>>, vector<256x1xf32>
    %c0_3 = arith.constant 0 : index
    %c0_4 = arith.constant 0 : index
    %2 = vector.load %arg3[%c0_3, %c0_4] : memref<1x256xf32, #tpu.memory_space<vmem>>, vector<1x256xf32>
    %3 = tpu.iota {dimensions = array<i32: 1>} : vector<256x256xi32>
    %4 = tpu.iota {dimensions = array<i32: 0>} : vector<256x1xi32>
    %c256_i32 = arith.constant 256 : i32
    %5 = arith.muli %arg0, %c256_i32 : i32
    %6 = vector.broadcast %5 : i32 to vector<256x1xi32>
    %7 = arith.addi %4, %6 : vector<256x1xi32>
    %8 = vector.broadcast %7 : vector<256x1xi32> to vector<256x256xi32>
    %9 = arith.cmpi eq, %3, %8 : vector<256x256xi32>
    %10 = arith.extui %9 : vector<256x256xi1> to vector<256x256xi32>
    %11 = arith.sitofp %10 : vector<256x256xi32> to vector<256x256xf32>
    %12 = arith.addf %0, %11 : vector<256x256xf32>
    %13 = vector.broadcast %1 : vector<256x1xf32> to vector<256x256xf32>
    %14 = arith.mulf %13, %12 : vector<256x256xf32>
    %15 = vector.broadcast %2 : vector<1x256xf32> to vector<256x256xf32>
    %16 = arith.mulf %14, %15 : vector<256x256xf32>
    %c0_5 = arith.constant 0 : index
    %c0_6 = arith.constant 0 : index
    %17 = vector.load %arg4[%c0_5, %c0_6] : memref<256x256xf32, #tpu.memory_space<vmem>>, vector<256x256xf32>
    tpu.vector_store %arg4[%c0_5, %c0_6], %16 {strides = array<i32>} : memref<256x256xf32, #tpu.memory_space<vmem>>, vector<256x256xf32>,
    return
  }
  func.func @transform_0(%arg0: i32) -> (i32, i32) {
    %c0_i32 = arith.constant 0 : i32
    %c0_i32_0 = arith.constant 0 : i32
    return %arg0, %c0_i32 : i32, i32
  }
  func.func @transform_1(%arg0: i32) -> (i32, i32) {
    %c0_i32 = arith.constant 0 : i32
    %c0_i32_0 = arith.constant 0 : i32
    return %arg0, %c0_i32 : i32, i32
  }
  func.func @transform_2(%arg0: i32) -> (i32, i32) {
    %c0_i32 = arith.constant 0 : i32
    %c0_i32_0 = arith.constant 0 : i32
    %c0_i32_1 = arith.constant 0 : i32
    return %c0_i32, %c0_i32_0 : i32, i32
  }
  func.func @transform_3(%arg0: i32) -> (i32, i32) {
    %c0_i32 = arith.constant 0 : i32
    %c0_i32_0 = arith.constant 0 : i32
    return %arg0, %c0_i32 : i32, i32
  }
}

module attributes {stable_mosaic.version = 11 : i64} {
  func.func @_row_sum_kernel(%arg0: i32, %arg1: memref<256x256xf32, #tpu.memory_space<vmem>>, %arg2: memref<256x1xf32, #tpu.memory_space<vmem>>) attributes {dimension_semantics = [#tpu.dimension_semantics<parallel>], iteration_bounds = array<i64: 1>, scalar_prefetch = 0 : i64, scratch_operands = 0 : i64, tpu.core_type = #tpu.core_type<tc>, window_params = [{transform_indices = @transform_0, window_bounds = array<i64: 256, 256>}, {transform_indices = @transform_1, window_bounds = array<i64: 256, 1>}]} {
    %c0 = arith.constant 0 : index
    %c0_0 = arith.constant 0 : index
    %0 = vector.load %arg1[%c0, %c0_0] : memref<256x256xf32, #tpu.memory_space<vmem>>, vector<256x256xf32>
    %cst = arith.constant dense<0.000000e+00> : vector<256xf32>
    %1 = vector.multi_reduction <add>, %0, %cst [1] : vector<256x256xf32> to vector<256xf32>
    %2 = vector.shape_cast %1 : vector<256xf32> to vector<256x1xf32>
    %c0_1 = arith.constant 0 : index
    %c0_2 = arith.constant 0 : index
    %3 = vector.load %arg2[%c0_1, %c0_2] : memref<256x1xf32, #tpu.memory_space<vmem>>, vector<256x1xf32>
    tpu.vector_store %arg2[%c0_1, %c0_2], %2 {strides = array<i32>} : memref<256x1xf32, #tpu.memory_space<vmem>>, vector<256x1xf32>,
    return
  }
  func.func @transform_0(%arg0: i32) -> (i32, i32) {
    %c0_i32 = arith.constant 0 : i32
    %c0_i32_0 = arith.constant 0 : i32
    return %arg0, %c0_i32 : i32, i32
  }
  func.func @transform_1(%arg0: i32) -> (i32, i32) {
    %c0_i32 = arith.constant 0 : i32
    %c0_i32_0 = arith.constant 0 : i32
    return %arg0, %c0_i32 : i32, i32
  }
}

</mosaic_0001>

<llo_original>
// kernel: estimate_adj_normalize.2
$region0: #{estimate_adj_normalize.2}
  #allocation0 [shape = 'u32[]', space=smem, size = 0x4, offset = 0x4, fixed_abs, tag = 'smem constant byte address 0x4 - core index']
  #allocation1 [shape = 'u32[72,128]{1,0:T(1,128)}', space=vmem, size = 0x9000, scoped, tag = 'internal scratch']
  %s0 = inlined_call_operand.vmem [shape: f32[256,256], index: 0, kind: input, shape index: {}]
  %s1 = inlined_call_operand.vmem [shape: f32[256,1], index: 1, kind: output, shape index: {}]
  %s2 = sld [smem:[#allocation0]]
  $region14: #{estimate_adj_normalize.2} parent=0
    _
  %s4 = ssub.s32 1, %s2
  %s5 = scalar_select 0, %s4, %s2
  // Predicated region
  $region2: #{estimate_adj_normalize.2} parent=0 // pred_check
    _
  $region3: #{estimate_adj_normalize.2} parent=0 // pred_check_branch
    %7 = sbr.rel (0) target = $region5
  $region4: #{estimate_adj_normalize.2} parent=0 // pred_region
    _
  $region5: #{estimate_adj_normalize.2} parent=0 // pred_fallthru
    _
  %v8 = vld [vmem:[%s0] sm:$0xff]
  %v9 = vld [vmem:[%s0 + $0x8] sm:$0xff]
  %v10 = vld [vmem:[%s0 + $0x10] sm:$0xff]
  %v11 = vld [vmem:[%s0 + $0x18] sm:$0xff]
  %v12 = vld [vmem:[%s0 + $0x20] sm:$0xff]
  %v13 = vld [vmem:[%s0 + $0x28] sm:$0xff]
  %v14 = vld [vmem:[%s0 + $0x30] sm:$0xff]
  %v15 = vld [vmem:[%s0 + $0x38] sm:$0xff]
  %v16 = vld [vmem:[%s0 + $0x40] sm:$0xff]
  %v17 = vld [vmem:[%s0 + $0x48] sm:$0xff]
  %v18 = vld [vmem:[%s0 + $0x50] sm:$0xff]
  %v19 = vld [vmem:[%s0 + $0x58] sm:$0xff]
  %v20 = vld [vmem:[%s0 + $0x60] sm:$0xff]
  %v21 = vld [vmem:[%s0 + $0x68] sm:$0xff]
  %v22 = vld [vmem:[%s0 + $0x70] sm:$0xff]
  %v23 = vld [vmem:[%s0 + $0x78] sm:$0xff]
  %v24 = vld [vmem:[%s0 + $0x80] sm:$0xff]
  %v25 = vld [vmem:[%s0 + $0x88] sm:$0xff]
  %v26 = vld [vmem:[%s0 + $0x90] sm:$0xff]
  %v27 = vld [vmem:[%s0 + $0x98] sm:$0xff]
  %v28 = vld [vmem:[%s0 + $0xa0] sm:$0xff]
  %v29 = vld [vmem:[%s0 + $0xa8] sm:$0xff]
  %v30 = vld [vmem:[%s0 + $0xb0] sm:$0xff]
  %v31 = vld [vmem:[%s0 + $0xb8] sm:$0xff]
  %v32 = vld [vmem:[%s0 + $0xc0] sm:$0xff]
  %v33 = vld [vmem:[%s0 + $0xc8] sm:$0xff]
  %v34 = vld [vmem:[%s0 + $0xd0] sm:$0xff]
  %v35 = vld [vmem:[%s0 + $0xd8] sm:$0xff]
  %v36 = vld [vmem:[%s0 + $0xe0] sm:$0xff]
  %v37 = vld [vmem:[%s0 + $0xe8] sm:$0xff]
  %v38 = vld [vmem:[%s0 + $0xf0] sm:$0xff]
  %v39 = vld [vmem:[%s0 + $0xf8] sm:$0xff]
  %v40 = vld [vmem:[%s0 + $0x100] sm:$0xff]
  %v41 = vld [vmem:[%s0 + $0x108] sm:$0xff]
  %v42 = vld [vmem:[%s0 + $0x110] sm:$0xff]
  %v43 = vld [vmem:[%s0 + $0x118] sm:$0xff]
  %v44 = vld [vmem:[%s0 + $0x120] sm:$0xff]
  %v45 = vld [vmem:[%s0 + $0x128] sm:$0xff]
  %v46 = vld [vmem:[%s0 + $0x130] sm:$0xff]
  %v47 = vld [vmem:[%s0 + $0x138] sm:$0xff]
  %v48 = vld [vmem:[%s0 + $0x140] sm:$0xff]
  %v49 = vld [vmem:[%s0 + $0x148] sm:$0xff]
  %v50 = vld [vmem:[%s0 + $0x150] sm:$0xff]
  %v51 = vld [vmem:[%s0 + $0x158] sm:$0xff]
  %v52 = vld [vmem:[%s0 + $0x160] sm:$0xff]
  %v53 = vld [vmem:[%s0 + $0x168] sm:$0xff]
  %v54 = vld [vmem:[%s0 + $0x170] sm:$0xff]
  %v55 = vld [vmem:[%s0 + $0x178] sm:$0xff]
  %v56 = vld [vmem:[%s0 + $0x180] sm:$0xff]
  %v57 = vld [vmem:[%s0 + $0x188] sm:$0xff]
  %v58 = vld [vmem:[%s0 + $0x190] sm:$0xff]
  %v59 = vld [vmem:[%s0 + $0x198] sm:$0xff]
  %v60 = vld [vmem:[%s0 + $0x1a0] sm:$0xff]
  %v61 = vld [vmem:[%s0 + $0x1a8] sm:$0xff]
  %v62 = vld [vmem:[%s0 + $0x1b0] sm:$0xff]
  %v63 = vld [vmem:[%s0 + $0x1b8] sm:$0xff]
  %v64 = vld [vmem:[%s0 + $0x1c0] sm:$0xff]
  %v65 = vld [vmem:[%s0 + $0x1c8] sm:$0xff]
  %v66 = vld [vmem:[%s0 + $0x1d0] sm:$0xff]
  %v67 = vld [vmem:[%s0 + $0x1d8] sm:$0xff]
  %v68 = vld [vmem:[%s0 + $0x1e0] sm:$0xff]
  %v69 = vld [vmem:[%s0 + $0x1e8] sm:$0xff]
  %v70 = vld [vmem:[%s0 + $0x1f0] sm:$0xff]
  %v71 = vld [vmem:[%s0 + $0x1f8] sm:$0xff]
  %v72 = vadd.f32 %v8, %v9
  %73 = vadd.xlane.f32.xlu0 %v72
  %v74 = vpop.xlane.xlu0 %73
  %v75 = vadd.f32 %v10, %v11
  %76 = vadd.xlane.f32.xlu0 %v75
  %v77 = vpop.xlane.xlu0 %76
  %v78 = vadd.f32 %v12, %v13
  %79 = vadd.xlane.f32.xlu0 %v78
  %v80 = vpop.xlane.xlu0 %79
  %v81 = vadd.f32 %v14, %v15
  %82 = vadd.xlane.f32.xlu0 %v81
  %v83 = vpop.xlane.xlu0 %82
  %v84 = vadd.f32 %v16, %v17
  %85 = vadd.xlane.f32.xlu0 %v84
  %v86 = vpop.xlane.xlu0 %85
  %v87 = vadd.f32 %v18, %v19
  %88 = vadd.xlane.f32.xlu0 %v87
  %v89 = vpop.xlane.xlu0 %88
  %v90 = vadd.f32 %v20, %v21
  %91 = vadd.xlane.f32.xlu0 %v90
  %v92 = vpop.xlane.xlu0 %91
  %v93 = vadd.f32 %v22, %v23
  %94 = vadd.xlane.f32.xlu0 %v93
  %v95 = vpop.xlane.xlu0 %94
  %v96 = vadd.f32 %v24, %v25
  %97 = vadd.xlane.f32.xlu0 %v96
  %v98 = vpop.xlane.xlu0 %97
  %v99 = vadd.f32 %v26, %v27
  %100 = vadd.xlane.f32.xlu0 %v99
  %v101 = vpop.xlane.xlu0 %100
  %v102 = vadd.f32 %v28, %v29
  %103 = vadd.xlane.f32.xlu0 %v102
  %v104 = vpop.xlane.xlu0 %103
  %v105 = vadd.f32 %v30, %v31
  %106 = vadd.xlane.f32.xlu0 %v105
  %v107 = vpop.xlane.xlu0 %106
  %v108 = vadd.f32 %v32, %v33
  %109 = vadd.xlane.f32.xlu0 %v108
  %v110 = vpop.xlane.xlu0 %109
  %v111 = vadd.f32 %v34, %v35
  %112 = vadd.xlane.f32.xlu0 %v111
  %v113 = vpop.xlane.xlu0 %112
  %v114 = vadd.f32 %v36, %v37
  %115 = vadd.xlane.f32.xlu0 %v114
  %v116 = vpop.xlane.xlu0 %115
  %v117 = vadd.f32 %v38, %v39
  %118 = vadd.xlane.f32.xlu0 %v117
  %v119 = vpop.xlane.xlu0 %118
  %v120 = vadd.f32 %v40, %v41
  %121 = vadd.xlane.f32.xlu0 %v120
  %v122 = vpop.xlane.xlu0 %121
  %v123 = vadd.f32 %v42, %v43
  %124 = vadd.xlane.f32.xlu0 %v123
  %v125 = vpop.xlane.xlu0 %124
  %v126 = vadd.f32 %v44, %v45
  %127 = vadd.xlane.f32.xlu0 %v126
  %v128 = vpop.xlane.xlu0 %127
  %v129 = vadd.f32 %v46, %v47
  %130 = vadd.xlane.f32.xlu0 %v129
  %v131 = vpop.xlane.xlu0 %130
  %v132 = vadd.f32 %v48, %v49
  %133 = vadd.xlane.f32.xlu0 %v132
  %v134 = vpop.xlane.xlu0 %133
  %v135 = vadd.f32 %v50, %v51
  %136 = vadd.xlane.f32.xlu0 %v135
  %v137 = vpop.xlane.xlu0 %136
  %v138 = vadd.f32 %v52, %v53
  %139 = vadd.xlane.f32.xlu0 %v138
  %v140 = vpop.xlane.xlu0 %139
  %v141 = vadd.f32 %v54, %v55
  %142 = vadd.xlane.f32.xlu0 %v141
  %v143 = vpop.xlane.xlu0 %142
  %v144 = vadd.f32 %v56, %v57
  %145 = vadd.xlane.f32.xlu0 %v144
  %v146 = vpop.xlane.xlu0 %145
  %v147 = vadd.f32 %v58, %v59
  %148 = vadd.xlane.f32.xlu0 %v147
  %v149 = vpop.xlane.xlu0 %148
  %v150 = vadd.f32 %v60, %v61
  %151 = vadd.xlane.f32.xlu0 %v150
  %v152 = vpop.xlane.xlu0 %151
  %v153 = vadd.f32 %v62, %v63
  %154 = vadd.xlane.f32.xlu0 %v153
  %v155 = vpop.xlane.xlu0 %154
  %v156 = vadd.f32 %v64, %v65
  %157 = vadd.xlane.f32.xlu0 %v156
  %v158 = vpop.xlane.xlu0 %157
  %v159 = vadd.f32 %v66, %v67
  %160 = vadd.xlane.f32.xlu0 %v159
  %v161 = vpop.xlane.xlu0 %160
  %v162 = vadd.f32 %v68, %v69
  %163 = vadd.xlane.f32.xlu0 %v162
  %v164 = vpop.xlane.xlu0 %163
  %v165 = vadd.f32 %v70, %v71
  %166 = vadd.xlane.f32.xlu0 %v165
  %v167 = vpop.xlane.xlu0 %166
  %vm168 = vcmask 7168
  %169 = vst.msk [vmem:[%s1] sm:$0xff] %vm168, %v74
  %170 = vst.msk [vmem:[%s1 + $0x8] sm:$0xff] %vm168, %v77
  %171 = vst.msk [vmem:[%s1 + $0x10] sm:$0xff] %vm168, %v80
  %172 = vst.msk [vmem:[%s1 + $0x18] sm:$0xff] %vm168, %v83
  %173 = vst.msk [vmem:[%s1 + $0x20] sm:$0xff] %vm168, %v86
  %174 = vst.msk [vmem:[%s1 + $0x28] sm:$0xff] %vm168, %v89
  %175 = vst.msk [vmem:[%s1 + $0x30] sm:$0xff] %vm168, %v92
  %176 = vst.msk [vmem:[%s1 + $0x38] sm:$0xff] %vm168, %v95
  %177 = vst.msk [vmem:[%s1 + $0x40] sm:$0xff] %vm168, %v98
  %178 = vst.msk [vmem:[%s1 + $0x48] sm:$0xff] %vm168, %v101
  %179 = vst.msk [vmem:[%s1 + $0x50] sm:$0xff] %vm168, %v104
  %180 = vst.msk [vmem:[%s1 + $0x58] sm:$0xff] %vm168, %v107
  %181 = vst.msk [vmem:[%s1 + $0x60] sm:$0xff] %vm168, %v110
  %182 = vst.msk [vmem:[%s1 + $0x68] sm:$0xff] %vm168, %v113
  %183 = vst.msk [vmem:[%s1 + $0x70] sm:$0xff] %vm168, %v116
  %184 = vst.msk [vmem:[%s1 + $0x78] sm:$0xff] %vm168, %v119
  %185 = vst.msk [vmem:[%s1 + $0x80] sm:$0xff] %vm168, %v122
  %186 = vst.msk [vmem:[%s1 + $0x88] sm:$0xff] %vm168, %v125
  %187 = vst.msk [vmem:[%s1 + $0x90] sm:$0xff] %vm168, %v128
  %188 = vst.msk [vmem:[%s1 + $0x98] sm:$0xff] %vm168, %v131
  %189 = vst.msk [vmem:[%s1 + $0xa0] sm:$0xff] %vm168, %v134
  %190 = vst.msk [vmem:[%s1 + $0xa8] sm:$0xff] %vm168, %v137
  %191 = vst.msk [vmem:[%s1 + $0xb0] sm:$0xff] %vm168, %v140
  %192 = vst.msk [vmem:[%s1 + $0xb8] sm:$0xff] %vm168, %v143
  %193 = vst.msk [vmem:[%s1 + $0xc0] sm:$0xff] %vm168, %v146
  %194 = vst.msk [vmem:[%s1 + $0xc8] sm:$0xff] %vm168, %v149
  %195 = vst.msk [vmem:[%s1 + $0xd0] sm:$0xff] %vm168, %v152
  %196 = vst.msk [vmem:[%s1 + $0xd8] sm:$0xff] %vm168, %v155
  %197 = vst.msk [vmem:[%s1 + $0xe0] sm:$0xff] %vm168, %v158
  %198 = vst.msk [vmem:[%s1 + $0xe8] sm:$0xff] %vm168, %v161
  %199 = vst.msk [vmem:[%s1 + $0xf0] sm:$0xff] %vm168, %v164
  %200 = vst.msk [vmem:[%s1 + $0xf8] sm:$0xff] %vm168, %v167
  // Predicated region
  $region6: #{estimate_adj_normalize.2} parent=0 // pred_check
    _
  $region7: #{estimate_adj_normalize.2} parent=0 // pred_check_branch
    %202 = sbr.rel (0) target = $region9
  $region8: #{estimate_adj_normalize.2} parent=0 // pred_region
    _
  $region9: #{estimate_adj_normalize.2} parent=0 // pred_fallthru
    _
  // Predicated region
  $region10: #{estimate_adj_normalize.2} parent=0 // pred_check
    _
  $region11: #{estimate_adj_normalize.2} parent=0 // pred_check_branch
    %204 = sbr.rel (0) target = $region13
  $region12: #{estimate_adj_normalize.2} parent=0 // pred_region
    _
  $region13: #{estimate_adj_normalize.2} parent=0 // pred_fallthru
    _

// kernel: estimate_adj_normalize.3
$region0: #{estimate_adj_normalize.3}
  #allocation0 [shape = 'u32[]', space=smem, size = 0x4, offset = 0x4, fixed_abs, tag = 'smem constant byte address 0x4 - core index']
  #allocation1 [shape = 'u32[72,128]{1,0:T(1,128)}', space=vmem, size = 0x9000, scoped, tag = 'internal scratch']
  %s0 = inlined_call_operand.vmem [shape: f32[256,256], index: 0, kind: input, shape index: {}]
  %s1 = inlined_call_operand.vmem [shape: f32[256,1], index: 1, kind: input, shape index: {}]
  %s2 = inlined_call_operand.vmem [shape: f32[1,256], index: 2, kind: input, shape index: {}]
  %s3 = inlined_call_operand.vmem [shape: f32[256,256], index: 3, kind: output, shape index: {}]
  %s4 = sld [smem:[#allocation0]]
  $region22: #{estimate_adj_normalize.3} parent=0
    _
  %s6 = ssub.s32 1, %s4
  %s7 = scalar_select 0, %s6, %s4
  // Predicated region
  $region2: #{estimate_adj_normalize.3} parent=0 // pred_check
    _
  $region3: #{estimate_adj_normalize.3} parent=0 // pred_check_branch
    %9 = sbr.rel (0) target = $region5
  $region4: #{estimate_adj_normalize.3} parent=0 // pred_region
    _
  $region5: #{estimate_adj_normalize.3} parent=0 // pred_fallthru
    _
  // Predicated region
  $region6: #{estimate_adj_normalize.3} parent=0 // pred_check
    _
  $region7: #{estimate_adj_normalize.3} parent=0 // pred_check_branch
    %11 = sbr.rel (0) target = $region9
  $region8: #{estimate_adj_normalize.3} parent=0 // pred_region
    _
  $region9: #{estimate_adj_normalize.3} parent=0 // pred_fallthru
    _
  // Predicated region
  $region10: #{estimate_adj_normalize.3} parent=0 // pred_check
    _
  $region11: #{estimate_adj_normalize.3} parent=0 // pred_check_branch
    %13 = sbr.rel (0) target = $region13
  $region12: #{estimate_adj_normalize.3} parent=0 // pred_region
    _
  $region13: #{estimate_adj_normalize.3} parent=0 // pred_fallthru
    _
  %v14 = vld [vmem:[%s0] sm:$0xff]
  %v15 = vld [vmem:[%s0 + $0x8] sm:$0xff]
  %v16 = vld [vmem:[%s0 + $0x10] sm:$0xff]
  %v17 = vld [vmem:[%s0 + $0x18] sm:$0xff]
  %v18 = vld [vmem:[%s0 + $0x20] sm:$0xff]
  %v19 = vld [vmem:[%s0 + $0x28] sm:$0xff]
  %v20 = vld [vmem:[%s0 + $0x30] sm:$0xff]
  %v21 = vld [vmem:[%s0 + $0x38] sm:$0xff]
  %v22 = vld [vmem:[%s0 + $0x40] sm:$0xff]
  %v23 = vld [vmem:[%s0 + $0x48] sm:$0xff]
  %v24 = vld [vmem:[%s0 + $0x50] sm:$0xff]
  %v25 = vld [vmem:[%s0 + $0x58] sm:$0xff]
  %v26 = vld [vmem:[%s0 + $0x60] sm:$0xff]
  %v27 = vld [vmem:[%s0 + $0x68] sm:$0xff]
  %v28 = vld [vmem:[%s0 + $0x70] sm:$0xff]
  %v29 = vld [vmem:[%s0 + $0x78] sm:$0xff]
  %v30 = vld [vmem:[%s0 + $0x80] sm:$0xff]
  %v31 = vld [vmem:[%s0 + $0x88] sm:$0xff]
  %v32 = vld [vmem:[%s0 + $0x90] sm:$0xff]
  %v33 = vld [vmem:[%s0 + $0x98] sm:$0xff]
  %v34 = vld [vmem:[%s0 + $0xa0] sm:$0xff]
  %v35 = vld [vmem:[%s0 + $0xa8] sm:$0xff]
  %v36 = vld [vmem:[%s0 + $0xb0] sm:$0xff]
  %v37 = vld [vmem:[%s0 + $0xb8] sm:$0xff]
  %v38 = vld [vmem:[%s0 + $0xc0] sm:$0xff]
  %v39 = vld [vmem:[%s0 + $0xc8] sm:$0xff]
  %v40 = vld [vmem:[%s0 + $0xd0] sm:$0xff]
  %v41 = vld [vmem:[%s0 + $0xd8] sm:$0xff]
  %v42 = vld [vmem:[%s0 + $0xe0] sm:$0xff]
  %v43 = vld [vmem:[%s0 + $0xe8] sm:$0xff]
  %v44 = vld [vmem:[%s0 + $0xf0] sm:$0xff]
  %v45 = vld [vmem:[%s0 + $0xf8] sm:$0xff]
  %v46 = vld [vmem:[%s0 + $0x100] sm:$0xff]
  %v47 = vld [vmem:[%s0 + $0x108] sm:$0xff]
  %v48 = vld [vmem:[%s0 + $0x110] sm:$0xff]
  %v49 = vld [vmem:[%s0 + $0x118] sm:$0xff]
  %v50 = vld [vmem:[%s0 + $0x120] sm:$0xff]
  %v51 = vld [vmem:[%s0 + $0x128] sm:$0xff]
  %v52 = vld [vmem:[%s0 + $0x130] sm:$0xff]
  %v53 = vld [vmem:[%s0 + $0x138] sm:$0xff]
  %v54 = vld [vmem:[%s0 + $0x140] sm:$0xff]
  %v55 = vld [vmem:[%s0 + $0x148] sm:$0xff]
  %v56 = vld [vmem:[%s0 + $0x150] sm:$0xff]
  %v57 = vld [vmem:[%s0 + $0x158] sm:$0xff]
  %v58 = vld [vmem:[%s0 + $0x160] sm:$0xff]
  %v59 = vld [vmem:[%s0 + $0x168] sm:$0xff]
  %v60 = vld [vmem:[%s0 + $0x170] sm:$0xff]
  %v61 = vld [vmem:[%s0 + $0x178] sm:$0xff]
  %v62 = vld [vmem:[%s0 + $0x180] sm:$0xff]
  %v63 = vld [vmem:[%s0 + $0x188] sm:$0xff]
  %v64 = vld [vmem:[%s0 + $0x190] sm:$0xff]
  %v65 = vld [vmem:[%s0 + $0x198] sm:$0xff]
  %v66 = vld [vmem:[%s0 + $0x1a0] sm:$0xff]
  %v67 = vld [vmem:[%s0 + $0x1a8] sm:$0xff]
  %v68 = vld [vmem:[%s0 + $0x1b0] sm:$0xff]
  %v69 = vld [vmem:[%s0 + $0x1b8] sm:$0xff]
  %v70 = vld [vmem:[%s0 + $0x1c0] sm:$0xff]
  %v71 = vld [vmem:[%s0 + $0x1c8] sm:$0xff]
  %v72 = vld [vmem:[%s0 + $0x1d0] sm:$0xff]
  %v73 = vld [vmem:[%s0 + $0x1d8] sm:$0xff]
  %v74 = vld [vmem:[%s0 + $0x1e0] sm:$0xff]
  %v75 = vld [vmem:[%s0 + $0x1e8] sm:$0xff]
  %v76 = vld [vmem:[%s0 + $0x1f0] sm:$0xff]
  %v77 = vld [vmem:[%s0 + $0x1f8] sm:$0xff]
  %v78 = vld [vmem:[%s1] sm:$0xff]
  %v79 = vld [vmem:[%s1 + $0x8] sm:$0xff]
  %v80 = vld [vmem:[%s1 + $0x10] sm:$0xff]
  %v81 = vld [vmem:[%s1 + $0x18] sm:$0xff]
  %v82 = vld [vmem:[%s1 + $0x20] sm:$0xff]
  %v83 = vld [vmem:[%s1 + $0x28] sm:$0xff]
  %v84 = vld [vmem:[%s1 + $0x30] sm:$0xff]
  %v85 = vld [vmem:[%s1 + $0x38] sm:$0xff]
  %v86 = vld [vmem:[%s1 + $0x40] sm:$0xff]
  %v87 = vld [vmem:[%s1 + $0x48] sm:$0xff]
  %v88 = vld [vmem:[%s1 + $0x50] sm:$0xff]
  %v89 = vld [vmem:[%s1 + $0x58] sm:$0xff]
  %v90 = vld [vmem:[%s1 + $0x60] sm:$0xff]
  %v91 = vld [vmem:[%s1 + $0x68] sm:$0xff]
  %v92 = vld [vmem:[%s1 + $0x70] sm:$0xff]
  %v93 = vld [vmem:[%s1 + $0x78] sm:$0xff]
  %v94 = vld [vmem:[%s1 + $0x80] sm:$0xff]
  %v95 = vld [vmem:[%s1 + $0x88] sm:$0xff]
  %v96 = vld [vmem:[%s1 + $0x90] sm:$0xff]
  %v97 = vld [vmem:[%s1 + $0x98] sm:$0xff]
  %v98 = vld [vmem:[%s1 + $0xa0] sm:$0xff]
  %v99 = vld [vmem:[%s1 + $0xa8] sm:$0xff]
  %v100 = vld [vmem:[%s1 + $0xb0] sm:$0xff]
  %v101 = vld [vmem:[%s1 + $0xb8] sm:$0xff]
  %v102 = vld [vmem:[%s1 + $0xc0] sm:$0xff]
  %v103 = vld [vmem:[%s1 + $0xc8] sm:$0xff]
  %v104 = vld [vmem:[%s1 + $0xd0] sm:$0xff]
  %v105 = vld [vmem:[%s1 + $0xd8] sm:$0xff]
  %v106 = vld [vmem:[%s1 + $0xe0] sm:$0xff]
  %v107 = vld [vmem:[%s1 + $0xe8] sm:$0xff]
  %v108 = vld [vmem:[%s1 + $0xf0] sm:$0xff]
  %v109 = vld [vmem:[%s1 + $0xf8] sm:$0xff]
  %v110 = vld [vmem:[%s2] sm:$0x3]
  %v111 = vlaneseq
  %v112 = vand.u32 %v111, 127
  %v113 = vadd.s32 %v112, 128
  %v114 = vlaneseq
  %v115 = vshrl.u32 %v114, 7
  %v116 = vadd.s32 %v115, 8
  %v117 = vadd.s32 %v115, 16
  %v118 = vadd.s32 %v115, 24
  %v119 = vadd.s32 %v115, 32
  %v120 = vadd.s32 %v115, 40
  %v121 = vadd.s32 %v115, 48
  %v122 = vadd.s32 %v115, 56
  %v123 = vadd.s32 %v115, 64
  %v124 = vadd.s32 %v115, 72
  %v125 = vadd.s32 %v115, 80
  %v126 = vadd.s32 %v115, 88
  %v127 = vadd.s32 %v115, 96
  %v128 = vadd.s32 %v115, 104
  %v129 = vadd.s32 %v115, 112
  %v130 = vadd.s32 %v115, 120
  %v131 = vadd.s32 %v115, 128
  %v132 = vadd.s32 %v115, 136
  %v133 = vadd.s32 %v115, 144
  %v134 = vadd.s32 %v115, 152
  %v135 = vadd.s32 %v115, 160
  %v136 = vadd.s32 %v115, 168
  %v137 = vadd.s32 %v115, 176
  %v138 = vadd.s32 %v115, 184
  %v139 = vadd.s32 %v115, 192
  %v140 = vadd.s32 %v115, 200
  %v141 = vadd.s32 %v115, 208
  %v142 = vadd.s32 %v115, 216
  %v143 = vadd.s32 %v115, 224
  %v144 = vadd.s32 %v115, 232
  %v145 = vadd.s32 %v115, 240
  %v146 = vadd.s32 %v115, 248
  %s147 = smul.u32 0, 256
  %v148 = vstv %s147
  %v149 = vadd.s32 %v115, %v148
  %v150 = vadd.s32 %v116, %v148
  %v151 = vadd.s32 %v117, %v148
  %v152 = vadd.s32 %v118, %v148
  %v153 = vadd.s32 %v119, %v148
  %v154 = vadd.s32 %v120, %v148
  %v155 = vadd.s32 %v121, %v148
  %v156 = vadd.s32 %v122, %v148
  %v157 = vadd.s32 %v123, %v148
  %v158 = vadd.s32 %v124, %v148
  %v159 = vadd.s32 %v125, %v148
  %v160 = vadd.s32 %v126, %v148
  %v161 = vadd.s32 %v127, %v148
  %v162 = vadd.s32 %v128, %v148
  %v163 = vadd.s32 %v129, %v148
  %v164 = vadd.s32 %v130, %v148
  %v165 = vadd.s32 %v131, %v148
  %v166 = vadd.s32 %v132, %v148
  %v167 = vadd.s32 %v133, %v148
  %v168 = vadd.s32 %v134, %v148
  %v169 = vadd.s32 %v135, %v148
  %v170 = vadd.s32 %v136, %v148
  %v171 = vadd.s32 %v137, %v148
  %v172 = vadd.s32 %v138, %v148
  %v173 = vadd.s32 %v139, %v148
  %v174 = vadd.s32 %v140, %v148
  %v175 = vadd.s32 %v141, %v148
  %v176 = vadd.s32 %v142, %v148
  %v177 = vadd.s32 %v143, %v148
  %v178 = vadd.s32 %v144, %v148
  %v179 = vadd.s32 %v145, %v148
  %v180 = vadd.s32 %v146, %v148
  %vm181 = vcmp.eq.s32.totalorder %v112, %v149
  %vm182 = vcmp.eq.s32.totalorder %v113, %v149
  %vm183 = vcmp.eq.s32.totalorder %v112, %v150
  %vm184 = vcmp.eq.s32.totalorder %v113, %v150
  %vm185 = vcmp.eq.s32.totalorder %v112, %v151
  %vm186 = vcmp.eq.s32.totalorder %v113, %v151
  %vm187 = vcmp.eq.s32.totalorder %v112, %v152
  %vm188 = vcmp.eq.s32.totalorder %v113, %v152
  %vm189 = vcmp.eq.s32.totalorder %v112, %v153
  %vm190 = vcmp.eq.s32.totalorder %v113, %v153
  %vm191 = vcmp.eq.s32.totalorder %v112, %v154
  %vm192 = vcmp.eq.s32.totalorder %v113, %v154
  %vm193 = vcmp.eq.s32.totalorder %v112, %v155
  %vm194 = vcmp.eq.s32.totalorder %v113, %v155
  %vm195 = vcmp.eq.s32.totalorder %v112, %v156
  %vm196 = vcmp.eq.s32.totalorder %v113, %v156
  %vm197 = vcmp.eq.s32.totalorder %v112, %v157
  %vm198 = vcmp.eq.s32.totalorder %v113, %v157
  %vm199 = vcmp.eq.s32.totalorder %v112, %v158
  %vm200 = vcmp.eq.s32.totalorder %v113, %v158
  %vm201 = vcmp.eq.s32.totalorder %v112, %v159
  %vm202 = vcmp.eq.s32.totalorder %v113, %v159
  %vm203 = vcmp.eq.s32.totalorder %v112, %v160
  %vm204 = vcmp.eq.s32.totalorder %v113, %v160
  %vm205 = vcmp.eq.s32.totalorder %v112, %v161
  %vm206 = vcmp.eq.s32.totalorder %v113, %v161
  %vm207 = vcmp.eq.s32.totalorder %v112, %v162
  %vm208 = vcmp.eq.s32.totalorder %v113, %v162
  %vm209 = vcmp.eq.s32.totalorder %v112, %v163
  %vm210 = vcmp.eq.s32.totalorder %v113, %v163
  %vm211 = vcmp.eq.s32.totalorder %v112, %v164
  %vm212 = vcmp.eq.s32.totalorder %v113, %v164
  %vm213 = vcmp.eq.s32.totalorder %v112, %v165
  %vm214 = vcmp.eq.s32.totalorder %v113, %v165
  %vm215 = vcmp.eq.s32.totalorder %v112, %v166
  %vm216 = vcmp.eq.s32.totalorder %v113, %v166
  %vm217 = vcmp.eq.s32.totalorder %v112, %v167
  %vm218 = vcmp.eq.s32.totalorder %v113, %v167
  %vm219 = vcmp.eq.s32.totalorder %v112, %v168
  %vm220 = vcmp.eq.s32.totalorder %v113, %v168
  %vm221 = vcmp.eq.s32.totalorder %v112, %v169
  %vm222 = vcmp.eq.s32.totalorder %v113, %v169
  %vm223 = vcmp.eq.s32.totalorder %v112, %v170
  %vm224 = vcmp.eq.s32.totalorder %v113, %v170
  %vm225 = vcmp.eq.s32.totalorder %v112, %v171
  %vm226 = vcmp.eq.s32.totalorder %v113, %v171
  %vm227 = vcmp.eq.s32.totalorder %v112, %v172
  %vm228 = vcmp.eq.s32.totalorder %v113, %v172
  %vm229 = vcmp.eq.s32.totalorder %v112, %v173
  %vm230 = vcmp.eq.s32.totalorder %v113, %v173
  %vm231 = vcmp.eq.s32.totalorder %v112, %v174
  %vm232 = vcmp.eq.s32.totalorder %v113, %v174
  %vm233 = vcmp.eq.s32.totalorder %v112, %v175
  %vm234 = vcmp.eq.s32.totalorder %v113, %v175
  %vm235 = vcmp.eq.s32.totalorder %v112, %v176
  %vm236 = vcmp.eq.s32.totalorder %v113, %v176
  %vm237 = vcmp.eq.s32.totalorder %v112, %v177
  %vm238 = vcmp.eq.s32.totalorder %v113, %v177
  %vm239 = vcmp.eq.s32.totalorder %v112, %v178
  %vm240 = vcmp.eq.s32.totalorder %v113, %v178
  %vm241 = vcmp.eq.s32.totalorder %v112, %v179
  %vm242 = vcmp.eq.s32.totalorder %v113, %v179
  %vm243 = vcmp.eq.s32.totalorder %v112, %v180
  %vm244 = vcmp.eq.s32.totalorder %v113, %v180
  %v245 = vsel %vm181, 1, 0
  %v246 = vsel %vm182, 1, 0
  %v247 = vsel %vm183, 1, 0
  %v248 = vsel %vm184, 1, 0
  %v249 = vsel %vm185, 1, 0
  %v250 = vsel %vm186, 1, 0
  %v251 = vsel %vm187, 1, 0
  %v252 = vsel %vm188, 1, 0
  %v253 = vsel %vm189, 1, 0
  %v254 = vsel %vm190, 1, 0
  %v255 = vsel %vm191, 1, 0
  %v256 = vsel %vm192, 1, 0
  %v257 = vsel %vm193, 1, 0
  %v258 = vsel %vm194, 1, 0
  %v259 = vsel %vm195, 1, 0
  %v260 = vsel %vm196, 1, 0
  %v261 = vsel %vm197, 1, 0
  %v262 = vsel %vm198, 1, 0
  %v263 = vsel %vm199, 1, 0
  %v264 = vsel %vm200, 1, 0
  %v265 = vsel %vm201, 1, 0
  %v266 = vsel %vm202, 1, 0
  %v267 = vsel %vm203, 1, 0
  %v268 = vsel %vm204, 1, 0
  %v269 = vsel %vm205, 1, 0
  %v270 = vsel %vm206, 1, 0
  %v271 = vsel %vm207, 1, 0
  %v272 = vsel %vm208, 1, 0
  %v273 = vsel %vm209, 1, 0
  %v274 = vsel %vm210, 1, 0
  %v275 = vsel %vm211, 1, 0
  %v276 = vsel %vm212, 1, 0
  %v277 = vsel %vm213, 1, 0
  %v278 = vsel %vm214, 1, 0
  %v279 = vsel %vm215, 1, 0
  %v280 = vsel %vm216, 1, 0
  %v281 = vsel %vm217, 1, 0
  %v282 = vsel %vm218, 1, 0
  %v283 = vsel %vm219, 1, 0
  %v284 = vsel %vm220, 1, 0
  %v285 = vsel %vm221, 1, 0
  %v286 = vsel %vm222, 1, 0
  %v287 = vsel %vm223, 1, 0
  %v288 = vsel %vm224, 1, 0
  %v289 = vsel %vm225, 1, 0
  %v290 = vsel %vm226, 1, 0
  %v291 = vsel %vm227, 1, 0
  %v292 = vsel %vm228, 1, 0
  %v293 = vsel %vm229, 1, 0
  %v294 = vsel %vm230, 1, 0
  %v295 = vsel %vm231, 1, 0
  %v296 = vsel %vm232, 1, 0
  %v297 = vsel %vm233, 1, 0
  %v298 = vsel %vm234, 1, 0
  %v299 = vsel %vm235, 1, 0
  %v300 = vsel %vm236, 1, 0
  %v301 = vsel %vm237, 1, 0
  %v302 = vsel %vm238, 1, 0
  %v303 = vsel %vm239, 1, 0
  %v304 = vsel %vm240, 1, 0
  %v305 = vsel %vm241, 1, 0
  %v306 = vsel %vm242, 1, 0
  %v307 = vsel %vm243, 1, 0
  %v308 = vsel %vm244, 1, 0
  %v309 = vcvt.s32.f32 %v245
  %v310 = vcvt.s32.f32 %v246
  %v311 = vcvt.s32.f32 %v247
  %v312 = vcvt.s32.f32 %v248
  %v313 = vcvt.s32.f32 %v249
  %v314 = vcvt.s32.f32 %v250
  %v315 = vcvt.s32.f32 %v251
  %v316 = vcvt.s32.f32 %v252
  %v317 = vcvt.s32.f32 %v253
  %v318 = vcvt.s32.f32 %v254
  %v319 = vcvt.s32.f32 %v255
  %v320 = vcvt.s32.f32 %v256
  %v321 = vcvt.s32.f32 %v257
  %v322 = vcvt.s32.f32 %v258
  %v323 = vcvt.s32.f32 %v259
  %v324 = vcvt.s32.f32 %v260
  %v325 = vcvt.s32.f32 %v261
  %v326 = vcvt.s32.f32 %v262
  %v327 = vcvt.s32.f32 %v263
  %v328 = vcvt.s32.f32 %v264
  %v329 = vcvt.s32.f32 %v265
  %v330 = vcvt.s32.f32 %v266
  %v331 = vcvt.s32.f32 %v267
  %v332 = vcvt.s32.f32 %v268
  %v333 = vcvt.s32.f32 %v269
  %v334 = vcvt.s32.f32 %v270
  %v335 = vcvt.s32.f32 %v271
  %v336 = vcvt.s32.f32 %v272
  %v337 = vcvt.s32.f32 %v273
  %v338 = vcvt.s32.f32 %v274
  %v339 = vcvt.s32.f32 %v275
  %v340 = vcvt.s32.f32 %v276
  %v341 = vcvt.s32.f32 %v277
  %v342 = vcvt.s32.f32 %v278
  %v343 = vcvt.s32.f32 %v279
  %v344 = vcvt.s32.f32 %v280
  %v345 = vcvt.s32.f32 %v281
  %v346 = vcvt.s32.f32 %v282
  %v347 = vcvt.s32.f32 %v283
  %v348 = vcvt.s32.f32 %v284
  %v349 = vcvt.s32.f32 %v285
  %v350 = vcvt.s32.f32 %v286
  %v351 = vcvt.s32.f32 %v287
  %v352 = vcvt.s32.f32 %v288
  %v353 = vcvt.s32.f32 %v289
  %v354 = vcvt.s32.f32 %v290
  %v355 = vcvt.s32.f32 %v291
  %v356 = vcvt.s32.f32 %v292
  %v357 = vcvt.s32.f32 %v293
  %v358 = vcvt.s32.f32 %v294
  %v359 = vcvt.s32.f32 %v295
  %v360 = vcvt.s32.f32 %v296
  %v361 = vcvt.s32.f32 %v297
  %v362 = vcvt.s32.f32 %v298
  %v363 = vcvt.s32.f32 %v299
  %v364 = vcvt.s32.f32 %v300
  %v365 = vcvt.s32.f32 %v301
  %v366 = vcvt.s32.f32 %v302
  %v367 = vcvt.s32.f32 %v303
  %v368 = vcvt.s32.f32 %v304
  %v369 = vcvt.s32.f32 %v305
  %v370 = vcvt.s32.f32 %v306
  %v371 = vcvt.s32.f32 %v307
  %v372 = vcvt.s32.f32 %v308
  %v373 = vadd.f32 %v14, %v309
  %v374 = vadd.f32 %v15, %v310
  %v375 = vadd.f32 %v16, %v311
  %v376 = vadd.f32 %v17, %v312
  %v377 = vadd.f32 %v18, %v313
  %v378 = vadd.f32 %v19, %v314
  %v379 = vadd.f32 %v20, %v315
  %v380 = vadd.f32 %v21, %v316
  %v381 = vadd.f32 %v22, %v317
  %v382 = vadd.f32 %v23, %v318
  %v383 = vadd.f32 %v24, %v319
  %v384 = vadd.f32 %v25, %v320
  %v385 = vadd.f32 %v26, %v321
  %v386 = vadd.f32 %v27, %v322
  %v387 = vadd.f32 %v28, %v323
  %v388 = vadd.f32 %v29, %v324
  %v389 = vadd.f32 %v30, %v325
  %v390 = vadd.f32 %v31, %v326
  %v391 = vadd.f32 %v32, %v327
  %v392 = vadd.f32 %v33, %v328
  %v393 = vadd.f32 %v34, %v329
  %v394 = vadd.f32 %v35, %v330
  %v395 = vadd.f32 %v36, %v331
  %v396 = vadd.f32 %v37, %v332
  %v397 = vadd.f32 %v38, %v333
  %v398 = vadd.f32 %v39, %v334
  %v399 = vadd.f32 %v40, %v335
  %v400 = vadd.f32 %v41, %v336
  %v401 = vadd.f32 %v42, %v337
  %v402 = vadd.f32 %v43, %v338
  %v403 = vadd.f32 %v44, %v339
  %v404 = vadd.f32 %v45, %v340
  %v405 = vadd.f32 %v46, %v341
  %v406 = vadd.f32 %v47, %v342
  %v407 = vadd.f32 %v48, %v343
  %v408 = vadd.f32 %v49, %v344
  %v409 = vadd.f32 %v50, %v345
  %v410 = vadd.f32 %v51, %v346
  %v411 = vadd.f32 %v52, %v347
  %v412 = vadd.f32 %v53, %v348
  %v413 = vadd.f32 %v54, %v349
  %v414 = vadd.f32 %v55, %v350
  %v415 = vadd.f32 %v56, %v351
  %v416 = vadd.f32 %v57, %v352
  %v417 = vadd.f32 %v58, %v353
  %v418 = vadd.f32 %v59, %v354
  %v419 = vadd.f32 %v60, %v355
  %v420 = vadd.f32 %v61, %v356
  %v421 = vadd.f32 %v62, %v357
  %v422 = vadd.f32 %v63, %v358
  %v423 = vadd.f32 %v64, %v359
  %v424 = vadd.f32 %v65, %v360
  %v425 = vadd.f32 %v66, %v361
  %v426 = vadd.f32 %v67, %v362
  %v427 = vadd.f32 %v68, %v363
  %v428 = vadd.f32 %v69, %v364
  %v429 = vadd.f32 %v70, %v365
  %v430 = vadd.f32 %v71, %v366
  %v431 = vadd.f32 %v72, %v367
  %v432 = vadd.f32 %v73, %v368
  %v433 = vadd.f32 %v74, %v369
  %v434 = vadd.f32 %v75, %v370
  %v435 = vadd.f32 %v76, %v371
  %v436 = vadd.f32 %v77, %v372
  %438 = vset.pattern.permute.xlu0 0
  %439 = vperm.xlu0 %438, %v78
  %v440 = vpop.permute.xlu0 %439
  %443 = vset.pattern.permute.xlu0 0
  %444 = vperm.xlu0 %443, %v79
  %v445 = vpop.permute.xlu0 %444
  %448 = vset.pattern.permute.xlu0 0
  %449 = vperm.xlu0 %448, %v80
  %v450 = vpop.permute.xlu0 %449
  %453 = vset.pattern.permute.xlu0 0
  %454 = vperm.xlu0 %453, %v81
  %v455 = vpop.permute.xlu0 %454
  %458 = vset.pattern.permute.xlu0 0
  %459 = vperm.xlu0 %458, %v82
  %v460 = vpop.permute.xlu0 %459
  %463 = vset.pattern.permute.xlu0 0
  %464 = vperm.xlu0 %463, %v83
  %v465 = vpop.permute.xlu0 %464
  %468 = vset.pattern.permute.xlu0 0
  %469 = vperm.xlu0 %468, %v84
  %v470 = vpop.permute.xlu0 %469
  %473 = vset.pattern.permute.xlu0 0
  %474 = vperm.xlu0 %473, %v85
  %v475 = vpop.permute.xlu0 %474
  %478 = vset.pattern.permute.xlu0 0
  %479 = vperm.xlu0 %478, %v86
  %v480 = vpop.permute.xlu0 %479
  %483 = vset.pattern.permute.xlu0 0
  %484 = vperm.xlu0 %483, %v87
  %v485 = vpop.permute.xlu0 %484
  %488 = vset.pattern.permute.xlu0 0
  %489 = vperm.xlu0 %488, %v88
  %v490 = vpop.permute.xlu0 %489
  %493 = vset.pattern.permute.xlu0 0
  %494 = vperm.xlu0 %493, %v89
  %v495 = vpop.permute.xlu0 %494
  %498 = vset.pattern.permute.xlu0 0
  %499 = vperm.xlu0 %498, %v90
  %v500 = vpop.permute.xlu0 %499
  %503 = vset.pattern.permute.xlu0 0
  %504 = vperm.xlu0 %503, %v91
  %v505 = vpop.permute.xlu0 %504
  %508 = vset.pattern.permute.xlu0 0
  %509 = vperm.xlu0 %508, %v92
  %v510 = vpop.permute.xlu0 %509
  %513 = vset.pattern.permute.xlu0 0
  %514 = vperm.xlu0 %513, %v93
  %v515 = vpop.permute.xlu0 %514
  %518 = vset.pattern.permute.xlu0 0
  %519 = vperm.xlu0 %518, %v94
  %v520 = vpop.permute.xlu0 %519
  %523 = vset.pattern.permute.xlu0 0
  %524 = vperm.xlu0 %523, %v95
  %v525 = vpop.permute.xlu0 %524
  %528 = vset.pattern.permute.xlu0 0
  %529 = vperm.xlu0 %528, %v96
  %v530 = vpop.permute.xlu0 %529
  %533 = vset.pattern.permute.xlu0 0
  %534 = vperm.xlu0 %533, %v97
  %v535 = vpop.permute.xlu0 %534
  %538 = vset.pattern.permute.xlu0 0
  %539 = vperm.xlu0 %538, %v98
  %v540 = vpop.permute.xlu0 %539
  %543 = vset.pattern.permute.xlu0 0
  %544 = vperm.xlu0 %543, %v99
  %v545 = vpop.permute.xlu0 %544
  %548 = vset.pattern.permute.xlu0 0
  %549 = vperm.xlu0 %548, %v100
  %v550 = vpop.permute.xlu0 %549
  %553 = vset.pattern.permute.xlu0 0
  %554 = vperm.xlu0 %553, %v101
  %v555 = vpop.permute.xlu0 %554
  %558 = vset.pattern.permute.xlu0 0
  %559 = vperm.xlu0 %558, %v102
  %v560 = vpop.permute.xlu0 %559
  %563 = vset.pattern.permute.xlu0 0
  %564 = vperm.xlu0 %563, %v103
  %v565 = vpop.permute.xlu0 %564
  %568 = vset.pattern.permute.xlu0 0
  %569 = vperm.xlu0 %568, %v104
  %v570 = vpop.permute.xlu0 %569
  %573 = vset.pattern.permute.xlu0 0
  %574 = vperm.xlu0 %573, %v105
  %v575 = vpop.permute.xlu0 %574
  %578 = vset.pattern.permute.xlu0 0
  %579 = vperm.xlu0 %578, %v106
  %v580 = vpop.permute.xlu0 %579
  %583 = vset.pattern.permute.xlu0 0
  %584 = vperm.xlu0 %583, %v107
  %v585 = vpop.permute.xlu0 %584
  %588 = vset.pattern.permute.xlu0 0
  %589 = vperm.xlu0 %588, %v108
  %v590 = vpop.permute.xlu0 %589
  %593 = vset.pattern.permute.xlu0 0
  %594 = vperm.xlu0 %593, %v109
  %v595 = vpop.permute.xlu0 %594
  %v597 = vmul.f32 %v440, %v373
  %v598 = vmul.f32 %v440, %v374
  %v599 = vmul.f32 %v445, %v375
  %v600 = vmul.f32 %v445, %v376
  %v601 = vmul.f32 %v450, %v377
  %v602 = vmul.f32 %v450, %v378
  %v603 = vmul.f32 %v455, %v379
  %v604 = vmul.f32 %v455, %v380
  %v605 = vmul.f32 %v460, %v381
  %v606 = vmul.f32 %v460, %v382
  %v607 = vmul.f32 %v465, %v383
  %v608 = vmul.f32 %v465, %v384
  %v609 = vmul.f32 %v470, %v385
  %v610 = vmul.f32 %v470, %v386
  %v611 = vmul.f32 %v475, %v387
  %v612 = vmul.f32 %v475, %v388
  %v613 = vmul.f32 %v480, %v389
  %v614 = vmul.f32 %v480, %v390
  %v615 = vmul.f32 %v485, %v391
  %v616 = vmul.f32 %v485, %v392
  %v617 = vmul.f32 %v490, %v393
  %v618 = vmul.f32 %v490, %v394
  %v619 = vmul.f32 %v495, %v395
  %v620 = vmul.f32 %v495, %v396
  %v621 = vmul.f32 %v500, %v397
  %v622 = vmul.f32 %v500, %v398
  %v623 = vmul.f32 %v505, %v399
  %v624 = vmul.f32 %v505, %v400
  %v625 = vmul.f32 %v510, %v401
  %v626 = vmul.f32 %v510, %v402
  %v627 = vmul.f32 %v515, %v403
  %v628 = vmul.f32 %v515, %v404
  %v629 = vmul.f32 %v520, %v405
  %v630 = vmul.f32 %v520, %v406
  %v631 = vmul.f32 %v525, %v407
  %v632 = vmul.f32 %v525, %v408
  %v633 = vmul.f32 %v530, %v409
  %v634 = vmul.f32 %v530, %v410
  %v635 = vmul.f32 %v535, %v411
  %v636 = vmul.f32 %v535, %v412
  %v637 = vmul.f32 %v540, %v413
  %v638 = vmul.f32 %v540, %v414
  %v639 = vmul.f32 %v545, %v415
  %v640 = vmul.f32 %v545, %v416
  %v641 = vmul.f32 %v550, %v417
  %v642 = vmul.f32 %v550, %v418
  %v643 = vmul.f32 %v555, %v419
  %v644 = vmul.f32 %v555, %v420
  %v645 = vmul.f32 %v560, %v421
  %v646 = vmul.f32 %v560, %v422
  %v647 = vmul.f32 %v565, %v423
  %v648 = vmul.f32 %v565, %v424
  %v649 = vmul.f32 %v570, %v425
  %v650 = vmul.f32 %v570, %v426
  %v651 = vmul.f32 %v575, %v427
  %v652 = vmul.f32 %v575, %v428
  %v653 = vmul.f32 %v580, %v429
  %v654 = vmul.f32 %v580, %v430
  %v655 = vmul.f32 %v585, %v431
  %v656 = vmul.f32 %v585, %v432
  %v657 = vmul.f32 %v590, %v433
  %v658 = vmul.f32 %v590, %v434
  %v659 = vmul.f32 %v595, %v435
  %v660 = vmul.f32 %v595, %v436
  %v662 = vperm.slane %v110, 0
  %v663 = vperm.slane %v110, 1
  %v666 = vmul.f32 %v597, %v662
  %v667 = vmul.f32 %v598, %v663
  %v668 = vmul.f32 %v599, %v662
  %v669 = vmul.f32 %v600, %v663
  %v670 = vmul.f32 %v601, %v662
  %v671 = vmul.f32 %v602, %v663
  %v672 = vmul.f32 %v603, %v662
  %v673 = vmul.f32 %v604, %v663
  %v674 = vmul.f32 %v605, %v662
  %v675 = vmul.f32 %v606, %v663
  %v676 = vmul.f32 %v607, %v662
  %v677 = vmul.f32 %v608, %v663
  %v678 = vmul.f32 %v609, %v662
  %v679 = vmul.f32 %v610, %v663
  %v680 = vmul.f32 %v611, %v662
  %v681 = vmul.f32 %v612, %v663
  %v682 = vmul.f32 %v613, %v662
  %v683 = vmul.f32 %v614, %v663
  %v684 = vmul.f32 %v615, %v662
  %v685 = vmul.f32 %v616, %v663
  %v686 = vmul.f32 %v617, %v662
  %v687 = vmul.f32 %v618, %v663
  %v688 = vmul.f32 %v619, %v662
  %v689 = vmul.f32 %v620, %v663
  %v690 = vmul.f32 %v621, %v662
  %v691 = vmul.f32 %v622, %v663
  %v692 = vmul.f32 %v623, %v662
  %v693 = vmul.f32 %v624, %v663
  %v694 = vmul.f32 %v625, %v662
  %v695 = vmul.f32 %v626, %v663
  %v696 = vmul.f32 %v627, %v662
  %v697 = vmul.f32 %v628, %v663
  %v698 = vmul.f32 %v629, %v662
  %v699 = vmul.f32 %v630, %v663
  %v700 = vmul.f32 %v631, %v662
  %v701 = vmul.f32 %v632, %v663
  %v702 = vmul.f32 %v633, %v662
  %v703 = vmul.f32 %v634, %v663
  %v704 = vmul.f32 %v635, %v662
  %v705 = vmul.f32 %v636, %v663
  %v706 = vmul.f32 %v637, %v662
  %v707 = vmul.f32 %v638, %v663
  %v708 = vmul.f32 %v639, %v662
  %v709 = vmul.f32 %v640, %v663
  %v710 = vmul.f32 %v641, %v662
  %v711 = vmul.f32 %v642, %v663
  %v712 = vmul.f32 %v643, %v662
  %v713 = vmul.f32 %v644, %v663
  %v714 = vmul.f32 %v645, %v662
  %v715 = vmul.f32 %v646, %v663
  %v716 = vmul.f32 %v647, %v662
  %v717 = vmul.f32 %v648, %v663
  %v718 = vmul.f32 %v649, %v662
  %v719 = vmul.f32 %v650, %v663
  %v720 = vmul.f32 %v651, %v662
  %v721 = vmul.f32 %v652, %v663
  %v722 = vmul.f32 %v653, %v662
  %v723 = vmul.f32 %v654, %v663
  %v724 = vmul.f32 %v655, %v662
  %v725 = vmul.f32 %v656, %v663
  %v726 = vmul.f32 %v657, %v662
  %v727 = vmul.f32 %v658, %v663
  %v728 = vmul.f32 %v659, %v662
  %v729 = vmul.f32 %v660, %v663
  %730 = vst [vmem:[%s3] sm:$0xff] %v666
  %731 = vst [vmem:[%s3 + $0x8] sm:$0xff] %v667
  %732 = vst [vmem:[%s3 + $0x10] sm:$0xff] %v668
  %733 = vst [vmem:[%s3 + $0x18] sm:$0xff] %v669
  %734 = vst [vmem:[%s3 + $0x20] sm:$0xff] %v670
  %735 = vst [vmem:[%s3 + $0x28] sm:$0xff] %v671
  %736 = vst [vmem:[%s3 + $0x30] sm:$0xff] %v672
  %737 = vst [vmem:[%s3 + $0x38] sm:$0xff] %v673
  %738 = vst [vmem:[%s3 + $0x40] sm:$0xff] %v674
  %739 = vst [vmem:[%s3 + $0x48] sm:$0xff] %v675
  %740 = vst [vmem:[%s3 + $0x50] sm:$0xff] %v676
  %741 = vst [vmem:[%s3 + $0x58] sm:$0xff] %v677
  %742 = vst [vmem:[%s3 + $0x60] sm:$0xff] %v678
  %743 = vst [vmem:[%s3 + $0x68] sm:$0xff] %v679
  %744 = vst [vmem:[%s3 + $0x70] sm:$0xff] %v680
  %745 = vst [vmem:[%s3 + $0x78] sm:$0xff] %v681
  %746 = vst [vmem:[%s3 + $0x80] sm:$0xff] %v682
  %747 = vst [vmem:[%s3 + $0x88] sm:$0xff] %v683
  %748 = vst [vmem:[%s3 + $0x90] sm:$0xff] %v684
  %749 = vst [vmem:[%s3 + $0x98] sm:$0xff] %v685
  %750 = vst [vmem:[%s3 + $0xa0] sm:$0xff] %v686
  %751 = vst [vmem:[%s3 + $0xa8] sm:$0xff] %v687
  %752 = vst [vmem:[%s3 + $0xb0] sm:$0xff] %v688
  %753 = vst [vmem:[%s3 + $0xb8] sm:$0xff] %v689
  %754 = vst [vmem:[%s3 + $0xc0] sm:$0xff] %v690
  %755 = vst [vmem:[%s3 + $0xc8] sm:$0xff] %v691
  %756 = vst [vmem:[%s3 + $0xd0] sm:$0xff] %v692
  %757 = vst [vmem:[%s3 + $0xd8] sm:$0xff] %v693
  %758 = vst [vmem:[%s3 + $0xe0] sm:$0xff] %v694
  %759 = vst [vmem:[%s3 + $0xe8] sm:$0xff] %v695
  %760 = vst [vmem:[%s3 + $0xf0] sm:$0xff] %v696
  %761 = vst [vmem:[%s3 + $0xf8] sm:$0xff] %v697
  %762 = vst [vmem:[%s3 + $0x100] sm:$0xff] %v698
  %763 = vst [vmem:[%s3 + $0x108] sm:$0xff] %v699
  %764 = vst [vmem:[%s3 + $0x110] sm:$0xff] %v700
  %765 = vst [vmem:[%s3 + $0x118] sm:$0xff] %v701
  %766 = vst [vmem:[%s3 + $0x120] sm:$0xff] %v702
  %767 = vst [vmem:[%s3 + $0x128] sm:$0xff] %v703
  %768 = vst [vmem:[%s3 + $0x130] sm:$0xff] %v704
  %769 = vst [vmem:[%s3 + $0x138] sm:$0xff] %v705
  %770 = vst [vmem:[%s3 + $0x140] sm:$0xff] %v706
  %771 = vst [vmem:[%s3 + $0x148] sm:$0xff] %v707
  %772 = vst [vmem:[%s3 + $0x150] sm:$0xff] %v708
  %773 = vst [vmem:[%s3 + $0x158] sm:$0xff] %v709
  %774 = vst [vmem:[%s3 + $0x160] sm:$0xff] %v710
  %775 = vst [vmem:[%s3 + $0x168] sm:$0xff] %v711
  %776 = vst [vmem:[%s3 + $0x170] sm:$0xff] %v712
  %777 = vst [vmem:[%s3 + $0x178] sm:$0xff] %v713
  %778 = vst [vmem:[%s3 + $0x180] sm:$0xff] %v714
  %779 = vst [vmem:[%s3 + $0x188] sm:$0xff] %v715
  %780 = vst [vmem:[%s3 + $0x190] sm:$0xff] %v716
  %781 = vst [vmem:[%s3 + $0x198] sm:$0xff] %v717
  %782 = vst [vmem:[%s3 + $0x1a0] sm:$0xff] %v718
  %783 = vst [vmem:[%s3 + $0x1a8] sm:$0xff] %v719
  %784 = vst [vmem:[%s3 + $0x1b0] sm:$0xff] %v720
  %785 = vst [vmem:[%s3 + $0x1b8] sm:$0xff] %v721
  %786 = vst [vmem:[%s3 + $0x1c0] sm:$0xff] %v722
  %787 = vst [vmem:[%s3 + $0x1c8] sm:$0xff] %v723
  %788 = vst [vmem:[%s3 + $0x1d0] sm:$0xff] %v724
  %789 = vst [vmem:[%s3 + $0x1d8] sm:$0xff] %v725
  %790 = vst [vmem:[%s3 + $0x1e0] sm:$0xff] %v726
  %791 = vst [vmem:[%s3 + $0x1e8] sm:$0xff] %v727
  %792 = vst [vmem:[%s3 + $0x1f0] sm:$0xff] %v728
  %793 = vst [vmem:[%s3 + $0x1f8] sm:$0xff] %v729
  // Predicated region
  $region14: #{estimate_adj_normalize.3} parent=0 // pred_check
    _
  $region15: #{estimate_adj_normalize.3} parent=0 // pred_check_branch
    %795 = sbr.rel (0) target = $region17
  $region16: #{estimate_adj_normalize.3} parent=0 // pred_region
    _
  $region17: #{estimate_adj_normalize.3} parent=0 // pred_fallthru
    _
  // Predicated region
  $region18: #{estimate_adj_normalize.3} parent=0 // pred_check
    _
  $region19: #{estimate_adj_normalize.3} parent=0 // pred_check_branch
    %797 = sbr.rel (0) target = $region21
  $region20: #{estimate_adj_normalize.3} parent=0 // pred_region
    _
  $region21: #{estimate_adj_normalize.3} parent=0 // pred_fallthru
    _

</llo_original>
